<compile_context>
chip_gen: v6e
topology: v6e:2x2x1
jax: 0.10.0
libtpu: 0.0.40
codegen_flags: <defaults>
</compile_context>

<pallas_src>
import jax
import jax.numpy as jnp
from jax.experimental import pallas as pl
from jax.experimental.pallas import tpu as pltpu

# ---- model hyperparameters (module defaults / small test shapes) ----
HIDDEN = 640        # hidden_size (module default), multiple of 128
NUM_LABELS = 3      # num_labels (module default)
PAD = 6             # self.pad
BATCH = 2
SEQ = 32            # test sequence length (must be > 1 + 2*PAD = 13)
L_OUT = SEQ - 1 - 2 * PAD
VOCAB = 25          # RNA-FM-style small vocab for the surrogate embedding

T_TILE = 128        # tokens per grid step (lane-dense output tile)


def _round_up(x, m):
    return (x + m - 1) // m * m


def _onehot_table_kernel(ids_ref, table_ref, out_ref):
    """One-hot token lookup into the composed (embed @ W.T + b) table.

    ids_ref   : (1, T_tile)      int32  VMEM  (token ids along lanes, 0-padded)
    table_ref : (C_pad, V_pad)   f32    VMEM  (composed logits table, transposed)
    out_ref   : (C_pad, T_tile)  f32    VMEM  (lane-dense logits slab)
    """
    v_pad = table_ref.shape[1]
    t_tile = ids_ref.shape[1]

    ids = ids_ref[...]                                               # (1, T_tile)
    vocab_iota = jax.lax.broadcasted_iota(jnp.int32, (v_pad, t_tile), 0)
    onehot = (vocab_iota == ids).astype(jnp.float32)                 # (V_pad, T_tile)

    # (C_pad, V_pad) x (V_pad, T_tile) -> (C_pad, T_tile); exact selection
    # (exactly one 1.0 per valid column), bias already folded into the table.
    out_ref[...] = jnp.dot(table_ref[...], onehot,
                           preferred_element_type=jnp.float32)


def rnafm_for_token_cls_forward(input_ids, params):
    """input_ids: (B, L) int32
       params:    embed (VOCAB, H) f32, cls_w (C, H) f32, cls_b (C,) f32
       returns:   (B, C, L - 1 - 2*PAD) f32   (== PyTorch forward output)
    """
    B, L = input_ids.shape
    embed = params["embed"]
    w = params["cls_w"]
    b = params["cls_b"]
    V, H = embed.shape
    C = w.shape[0]
    assert H % 128 == 0, "hidden dim must be lane-aligned"

    C_pad = _round_up(C, 8)                 # sublane-align output rows
    V_pad = _round_up(V, 128)               # lane-align the contraction dim
    T = B * L
    T_pad = _round_up(max(T, T_TILE), T_TILE)
    n_tiles = T_pad // T_TILE

    # Compose encoder-surrogate + classifier in the wrapper (tiny, XLA-fused):
    # table[v, c] = embed[v] . w[c] + b[c]; kernel sees it transposed & padded.
    # TODO(synk): with a real bert encoder this composition is invalid -- the
    #             classifier dot would take streamed (T, H) representations.
    table = embed @ w.T + b                                          # (V, C)
    table_t = jnp.zeros((C_pad, V_pad), jnp.float32).at[:C, :V].set(table.T)

    # Token ids along lanes, zero-padded (id 0 is a valid row; padded lanes are
    # sliced away below so their values never matter).
    ids_p = jnp.zeros((1, T_pad), jnp.int32).at[0, :T].set(
        input_ids.astype(jnp.int32).reshape(T))

    cost = pl.CostEstimate(
        flops=2 * T_pad * V_pad * C_pad,
        transcendentals=0,
        bytes_accessed=(ids_p.size * 4 + table_t.size * 4 + C_pad * T_pad * 4),
    )

    out_full = pl.pallas_call(
        _onehot_table_kernel,
        out_shape=jax.ShapeDtypeStruct((C_pad, T_pad), jnp.float32),
        grid_spec=pltpu.PrefetchScalarGridSpec(
            num_scalar_prefetch=0,
            grid=(n_tiles,),                           # token-parallel grid
            in_specs=[
                pl.BlockSpec((1, T_TILE), lambda i: (0, i)),
                # Constant index_map -> table stays resident across steps.
                pl.BlockSpec((C_pad, V_pad), lambda i: (0, 0)),
            ],
            out_specs=pl.BlockSpec((C_pad, T_TILE), lambda i: (0, i)),
        ),
        compiler_params=pltpu.CompilerParams(
            dimension_semantics=("parallel",),
        ),
        cost_estimate=cost,
    )(ids_p, table_t)

    # Strip padding, undo the token flattening, and apply the PyTorch
    # [:, 1+pad : -pad, :].transpose(1, 2) in the wrapper (fused by XLA).
    logits = out_full[:C, :T].reshape(C, B, L)           # (C, B, L)
    logits = jnp.transpose(logits, (1, 0, 2))            # (B, C, L)
    logits = logits[:, :, 1 + PAD: L - PAD]              # (B, C, L_out)
    return logits


def _reference_forward(input_ids, params):
    """Pure-JAX reference mirroring the PyTorch forward."""
    reps = jnp.take(params["embed"], input_ids, axis=0)          # (B, L, H)
    logits = reps @ params["cls_w"].T + params["cls_b"]          # (B, L, C)
    logits = logits[:, 1 + PAD: input_ids.shape[1] - PAD, :]     # (B, L_out, C)
    return jnp.transpose(logits, (0, 2, 1))                      # (B, C, L_out)


if __name__ == "__main__":
    key = jax.random.PRNGKey(0)
    k_emb, k_w, k_b, k_ids = jax.random.split(key, 4)

    params = {
        "embed": jax.random.normal(k_emb, (VOCAB, HIDDEN), jnp.float32) * 0.02,
        "cls_w": jax.random.normal(k_w, (NUM_LABELS, HIDDEN), jnp.float32) * 0.02,
        "cls_b": jax.random.normal(k_b, (NUM_LABELS,), jnp.float32) * 0.02,
    }
    input_ids = jax.random.randint(k_ids, (BATCH, SEQ), 0, VOCAB, jnp.int32)

    out = rnafm_for_token_cls_forward(input_ids, params)
    out = jax.block_until_ready(out)

    ref = _reference_forward(input_ids, params)
    assert out.shape == (BATCH, NUM_LABELS, L_OUT), out.shape
    assert jnp.allclose(out, ref, atol=1e-5, rtol=1e-5), "mismatch vs reference"

    print("KERNEL_OK")
</pallas_src>

<mosaic_0001>
module attributes {stable_mosaic.version = 11 : i64} {
  func.func @_onehot_table_kernel(%arg0: i32, %arg1: memref<1x128xi32, #tpu.memory_space<vmem>>, %arg2: memref<8x128xf32, #tpu.memory_space<vmem>>, %arg3: memref<8x128xf32, #tpu.memory_space<vmem>>) attributes {dimension_semantics = [#tpu.dimension_semantics<parallel>], iteration_bounds = array<i64: 1>, scalar_prefetch = 0 : i64, scratch_operands = 0 : i64, tpu.core_type = #tpu.core_type<tc>, window_params = [{transform_indices = @transform_0, window_bounds = array<i64: 1, 128>}, {pipeline_mode = #tpu.pipeline_mode<synchronous>, transform_indices = @transform_1, window_bounds = array<i64: 8, 128>}, {transform_indices = @transform_2, window_bounds = array<i64: 8, 128>}]} {
    %c0 = arith.constant 0 : index
    %c0_0 = arith.constant 0 : index
    %0 = vector.load %arg1[%c0, %c0_0] : memref<1x128xi32, #tpu.memory_space<vmem>>, vector<1x128xi32>
    %1 = tpu.iota {dimensions = array<i32: 0>} : vector<128x128xi32>
    %2 = vector.broadcast %0 : vector<1x128xi32> to vector<128x128xi32>
    %3 = arith.cmpi eq, %1, %2 : vector<128x128xi32>
    %4 = arith.extui %3 : vector<128x128xi1> to vector<128x128xi32>
    %5 = arith.sitofp %4 : vector<128x128xi32> to vector<128x128xf32>
    %c0_1 = arith.constant 0 : index
    %c0_2 = arith.constant 0 : index
    %6 = vector.load %arg2[%c0_1, %c0_2] : memref<8x128xf32, #tpu.memory_space<vmem>>, vector<8x128xf32>
    %cst = arith.constant dense<0.000000e+00> : vector<8x128xf32>
    %7 = tpu.matmul %6, %5, %cst {dimension_numbers = #tpu.dot_dimension_numbers<[1], [0], [0], [1], [0, 0, 1, 1], [], []>} : vector<8x128xf32>, vector<128x128xf32>, vector<8x128xf32> -> vector<8x128xf32>
    %c0_3 = arith.constant 0 : index
    %c0_4 = arith.constant 0 : index
    %8 = vector.load %arg3[%c0_3, %c0_4] : memref<8x128xf32, #tpu.memory_space<vmem>>, vector<8x128xf32>
    tpu.vector_store %arg3[%c0_3, %c0_4], %7 {strides = array<i32>} : memref<8x128xf32, #tpu.memory_space<vmem>>, vector<8x128xf32>,
    return
  }
  func.func @transform_0(%arg0: i32) -> (i32, i32) {
    %c0_i32 = arith.constant 0 : i32
    %c0_i32_0 = arith.constant 0 : i32
    return %c0_i32, %arg0 : i32, i32
  }
  func.func @transform_1(%arg0: i32) -> (i32, i32) {
    %c0_i32 = arith.constant 0 : i32
    %c0_i32_0 = arith.constant 0 : i32
    %c0_i32_1 = arith.constant 0 : i32
    return %c0_i32, %c0_i32_0 : i32, i32
  }
  func.func @transform_2(%arg0: i32) -> (i32, i32) {
    %c0_i32 = arith.constant 0 : i32
    %c0_i32_0 = arith.constant 0 : i32
    return %c0_i32, %arg0 : i32, i32
  }
}

</mosaic_0001>

<llo_original>
// kernel: tpu_custom_call.1
$region0: #{tpu_custom_call.1}
  #allocation0 [shape = 'u32[]', space=smem, size = 0x4, offset = 0x4, fixed_abs, tag = 'smem constant byte address 0x4 - core index']
  #allocation1 [shape = 'u32[144,128]{1,0:T(1,128)}', space=vmem, size = 0x12000, scoped, tag = 'internal scratch']
  %s0 = inlined_call_operand.hbm [shape: s32[1,128], index: 0, kind: input, shape index: {}]
  %s1 = inlined_call_operand.hbm [shape: f32[8,128], index: 1, kind: input, shape index: {}]
  %s2 = inlined_call_operand.hbm [shape: f32[8,128], index: 2, kind: output, shape index: {}]
  %s3 = sld [smem:[#allocation0]]
  $region26: #{tpu_custom_call.1} parent=0
    _
  %s5 = ssub.s32 1, %s3
  %s6 = scalar_select 0, %s5, %s3
  $region1: #{tpu_custom_call.1} parent=0
    #allocation2 [shape = 'u8[512]{0}', space=vmem, size = 0x400, scoped, tag = 'input window, operand 0, single buffered']
    #allocation3 [shape = 's32[1]{0}', space=sflag, size = 0x4, scoped, tag = 'scoped memory for tpu_custom_call.1']
    #allocation4 [shape = 's32[1]{0}', space=sflag, size = 0x4, scoped, tag = 'scoped memory for tpu_custom_call.1']
    #allocation5 [shape = 'u8[4096]{0}', space=vmem, size = 0x1000, scoped, tag = 'input window, operand 1, single buffered']
    #allocation6 [shape = 's32[1]{0}', space=sflag, size = 0x4, scoped, tag = 'scoped memory for tpu_custom_call.1']
    #allocation7 [shape = 'u8[4096]{0}', space=vmem, size = 0x1000, scoped, tag = 'output window, operand 0, single buffered']
    %7 = vsyncpa [#allocation3], 0
    %8 = vsyncpa [#allocation6], 0
    %9 = vsyncpa [#allocation4], 0
    // Predicated region
    $region2: #{tpu_custom_call.1} parent=1 // pred_check
      _
    $region3: #{tpu_custom_call.1} parent=1 // pred_check_branch
      %11 = sbr.rel (0) target = $region5
    $region4: #{tpu_custom_call.1} parent=1 // pred_region
      %s13 = ssub.s32 16, 16
      %14 = vsyncadd [#allocation3], %s13
      %s16 = sshll.u32 [#allocation2], 4
      %s17 = int_to_ptr.vmem [resolvable:$true] %s16
      %19 = dma.hbm_to_vmem [thread:$0]  %s0, 16, %s17, [#allocation3]
    $region5: #{tpu_custom_call.1} parent=1 // pred_fallthru
      _
    // Predicated region
    $region6: #{tpu_custom_call.1} parent=1 // pred_check
      _
    $region7: #{tpu_custom_call.1} parent=1 // pred_check_branch
      %21 = sbr.rel (0) target = $region9
    $region8: #{tpu_custom_call.1} parent=1 // pred_region
      %s23 = ssub.s32 128, 128
      %24 = vsyncadd [#allocation6], %s23
      %s26 = sshll.u32 [#allocation5], 4
      %s27 = int_to_ptr.vmem [resolvable:$true] %s26
      %29 = dma.hbm_to_vmem [thread:$0]  %s1, 128, %s27, [#allocation6]
    $region9: #{tpu_custom_call.1} parent=1 // pred_fallthru
      _
    // Predicated region
    $region10: #{tpu_custom_call.1} parent=1 // pred_check
      _
    $region11: #{tpu_custom_call.1} parent=1 // pred_check_branch
      %31 = sbr.rel (0) target = $region13
    $region12: #{tpu_custom_call.1} parent=1 // pred_region
      %32 = dma.done [#allocation3], 16
    $region13: #{tpu_custom_call.1} parent=1 // pred_fallthru
      _
    // Predicated region
    $region14: #{tpu_custom_call.1} parent=1 // pred_check
      _
    $region15: #{tpu_custom_call.1} parent=1 // pred_check_branch
      %34 = sbr.rel (0) target = $region17
    $region16: #{tpu_custom_call.1} parent=1 // pred_region
      %35 = dma.done [#allocation6], 128
    $region17: #{tpu_custom_call.1} parent=1 // pred_fallthru
      _
    %v36 = vld [vmem:[#allocation2] sm:$0x1]
    %v37 = vlaneseq
    %v38 = vshrl.u32 %v37, 7
    %v39 = vadd.s32 %v38, 8
    %v40 = vadd.s32 %v38, 16
    %v41 = vadd.s32 %v38, 24
    %v42 = vadd.s32 %v38, 32
    %v43 = vadd.s32 %v38, 40
    %v44 = vadd.s32 %v38, 48
    %v45 = vadd.s32 %v38, 56
    %v46 = vadd.s32 %v38, 64
    %v47 = vadd.s32 %v38, 72
    %v48 = vadd.s32 %v38, 80
    %v49 = vadd.s32 %v38, 88
    %v50 = vadd.s32 %v38, 96
    %v51 = vadd.s32 %v38, 104
    %v52 = vadd.s32 %v38, 112
    %v53 = vadd.s32 %v38, 120
    %v54 = vlaneseq
    %v55 = vshrl.u32 %v54, 7
    %v56 = vsub.s32 0, %v55
    %v57 = vrot.slane %v36, %v56
    %vm58 = vcmp.eq.s32.totalorder %v38, %v57
    %vm59 = vcmp.eq.s32.totalorder %v39, %v57
    %vm60 = vcmp.eq.s32.totalorder %v40, %v57
    %vm61 = vcmp.eq.s32.totalorder %v41, %v57
    %vm62 = vcmp.eq.s32.totalorder %v42, %v57
    %vm63 = vcmp.eq.s32.totalorder %v43, %v57
    %vm64 = vcmp.eq.s32.totalorder %v44, %v57
    %vm65 = vcmp.eq.s32.totalorder %v45, %v57
    %vm66 = vcmp.eq.s32.totalorder %v46, %v57
    %vm67 = vcmp.eq.s32.totalorder %v47, %v57
    %vm68 = vcmp.eq.s32.totalorder %v48, %v57
    %vm69 = vcmp.eq.s32.totalorder %v49, %v57
    %vm70 = vcmp.eq.s32.totalorder %v50, %v57
    %vm71 = vcmp.eq.s32.totalorder %v51, %v57
    %vm72 = vcmp.eq.s32.totalorder %v52, %v57
    %vm73 = vcmp.eq.s32.totalorder %v53, %v57
    %v74 = vsel %vm58, 1, 0
    %v75 = vsel %vm59, 1, 0
    %v76 = vsel %vm60, 1, 0
    %v77 = vsel %vm61, 1, 0
    %v78 = vsel %vm62, 1, 0
    %v79 = vsel %vm63, 1, 0
    %v80 = vsel %vm64, 1, 0
    %v81 = vsel %vm65, 1, 0
    %v82 = vsel %vm66, 1, 0
    %v83 = vsel %vm67, 1, 0
    %v84 = vsel %vm68, 1, 0
    %v85 = vsel %vm69, 1, 0
    %v86 = vsel %vm70, 1, 0
    %v87 = vsel %vm71, 1, 0
    %v88 = vsel %vm72, 1, 0
    %v89 = vsel %vm73, 1, 0
    %v90 = vcvt.s32.f32 %v74
    %v91 = vcvt.s32.f32 %v75
    %v92 = vcvt.s32.f32 %v76
    %v93 = vcvt.s32.f32 %v77
    %v94 = vcvt.s32.f32 %v78
    %v95 = vcvt.s32.f32 %v79
    %v96 = vcvt.s32.f32 %v80
    %v97 = vcvt.s32.f32 %v81
    %v98 = vcvt.s32.f32 %v82
    %v99 = vcvt.s32.f32 %v83
    %v100 = vcvt.s32.f32 %v84
    %v101 = vcvt.s32.f32 %v85
    %v102 = vcvt.s32.f32 %v86
    %v103 = vcvt.s32.f32 %v87
    %v104 = vcvt.s32.f32 %v88
    %v105 = vcvt.s32.f32 %v89
    %v106 = vld [vmem:[#allocation5] sm:$0xff]
    %107 = vmatprep.subr.mxu0 0.0
    %108 = vmatpush1.msra.mxu0 %v105
    %109 = vmatprep.subr.mxu0 0.0
    %110 = vmatpush1.msra.mxu0 %v104
    %111 = vmatprep.subr.mxu0 0.0
    %112 = vmatpush1.msra.mxu0 %v103
    %113 = vmatprep.subr.mxu0 0.0
    %114 = vmatpush1.msra.mxu0 %v102
    %115 = vmatprep.subr.mxu0 0.0
    %116 = vmatpush1.msra.mxu0 %v101
    %117 = vmatprep.subr.mxu0 0.0
    %118 = vmatpush1.msra.mxu0 %v100
    %119 = vmatprep.subr.mxu0 0.0
    %120 = vmatpush1.msra.mxu0 %v99
    %121 = vmatprep.subr.mxu0 0.0
    %122 = vmatpush1.msra.mxu0 %v98
    %123 = vmatprep.subr.mxu0 0.0
    %124 = vmatpush1.msra.mxu0 %v97
    %125 = vmatprep.subr.mxu0 0.0
    %126 = vmatpush1.msra.mxu0 %v96
    %127 = vmatprep.subr.mxu0 0.0
    %128 = vmatpush1.msra.mxu0 %v95
    %129 = vmatprep.subr.mxu0 0.0
    %130 = vmatpush1.msra.mxu0 %v94
    %131 = vmatprep.subr.mxu0 0.0
    %132 = vmatpush1.msra.mxu0 %v93
    %133 = vmatprep.subr.mxu0 0.0
    %134 = vmatpush1.msra.mxu0 %v92
    %135 = vmatprep.subr.mxu0 0.0
    %136 = vmatpush1.msra.mxu0 %v91
    %137 = vmatprep.subr.mxu0 0.0
    %138 = vmatpush1.msra.mxu0 %v90
    %139 = vmatprep.subr.mxu0 0.0
    %140 = vmatpush2.msra.mxu0 0.0
    %141 = vmatprep.subr.mxu0 0.0
    %142 = vmatpush2.msra.mxu0 0.0
    %143 = vmatprep.subr.mxu0 0.0
    %144 = vmatpush2.msra.mxu0 0.0
    %145 = vmatprep.subr.mxu0 0.0
    %146 = vmatpush2.msra.mxu0 0.0
    %147 = vmatprep.subr.mxu0 0.0
    %148 = vmatpush2.msra.mxu0 0.0
    %149 = vmatprep.subr.mxu0 0.0
    %150 = vmatpush2.msra.mxu0 0.0
    %151 = vmatprep.subr.mxu0 0.0
    %152 = vmatpush2.msra.mxu0 0.0
    %153 = vmatprep.subr.mxu0 0.0
    %154 = vmatpush2.msra.mxu0 0.0
    %155 = vmatprep.subr.mxu0 0.0
    %156 = vmatpush2.msra.mxu0 0.0
    %157 = vmatprep.subr.mxu0 0.0
    %158 = vmatpush2.msra.mxu0 0.0
    %159 = vmatprep.subr.mxu0 0.0
    %160 = vmatpush2.msra.mxu0 0.0
    %161 = vmatprep.subr.mxu0 0.0
    %162 = vmatpush2.msra.mxu0 0.0
    %163 = vmatprep.subr.mxu0 0.0
    %164 = vmatpush2.msra.mxu0 0.0
    %165 = vmatprep.subr.mxu0 0.0
    %166 = vmatpush2.msra.mxu0 0.0
    %167 = vmatprep.subr.mxu0 0.0
    %168 = vmatpush2.msra.mxu0 0.0
    %169 = vmatprep.subr.mxu0 0.0
    %170 = vmatpush2.msra.mxu0 0.0
    %171 = vmatprep.mubr.f32.mxu0 0.0
    %172 = vmatmul.mubr.f32.gmra.mxu0 %v106
    %v173 = vpop.f32.mrf.mxu0
    %v174 = vadd.f32 0.0, %v173
    %v175 = vpop.f32.mrf.mxu0
    %176 = vdwg.mxu0
    %177 = vst [vmem:[#allocation7] sm:$0xff] %v174
    // Predicated region
    $region18: #{tpu_custom_call.1} parent=1 // pred_check
      _
    $region19: #{tpu_custom_call.1} parent=1 // pred_check_branch
      %179 = sbr.rel (0) target = $region21
    $region20: #{tpu_custom_call.1} parent=1 // pred_region
      %s181 = ssub.s32 128, 128
      %182 = vsyncadd [#allocation4], %s181
      %s184 = sshll.u32 [#allocation7], 4
      %s185 = int_to_ptr.vmem [resolvable:$true] %s184
      %187 = dma.vmem_to_hbm [thread:$0]  %s185, 128, %s2, [#allocation4]
    $region21: #{tpu_custom_call.1} parent=1 // pred_fallthru
      _
    // Predicated region
    $region22: #{tpu_custom_call.1} parent=1 // pred_check
      _
    $region23: #{tpu_custom_call.1} parent=1 // pred_check_branch
      %189 = sbr.rel (0) target = $region25
    $region24: #{tpu_custom_call.1} parent=1 // pred_region
      %190 = dma.done [#allocation4], 128
    $region25: #{tpu_custom_call.1} parent=1 // pred_fallthru
      _
    %191 = vsyncpa [#allocation3], 1
    %192 = vsyncpa [#allocation6], 1
    %193 = vsyncpa [#allocation4], 1

</llo_original>
